<compile_context>
chip_gen: v7x
topology: tpu7x:2x2x1
jax: 0.10.0
libtpu: 0.0.40
codegen_flags: <defaults>
</compile_context>

<pallas_src>
import functools
import math

import jax
import jax.numpy as jnp
import numpy as np
from jax.experimental import pallas as pl
from jax.experimental.pallas import tpu as pltpu

_GN_EPS = 1e-5  # torch.nn.GroupNorm default eps


def _shuffle_attention_kernel(x_ref, p_ref, o_ref, *, inv_hw):
    # x_ref: (Rb, HWp)   activations (both halves interleaved row-wise)
    # p_ref: (Rb, 3)     packed per-row coefficients [a, cw, t0]
    x = x_ref[...].astype(jnp.float32)
    p = p_ref[...].astype(jnp.float32)

    p_a = p[:, 0:1]    # sweight*gn_w for spatial rows, 0 for channel rows
    p_cw = p[:, 1:2]   # cweight for channel rows, 0 for spatial rows
    p_t0 = p[:, 2:3]   # cbias for channel rows, sweight*gn_b + sbias otherwise

    # one pass over the row for both mean and E[x^2] (single-pass variance)
    s1 = jnp.sum(x, axis=-1, keepdims=True)            # (Rb, 1)
    s2 = jnp.sum(x * x, axis=-1, keepdims=True)        # (Rb, 1)
    mean = s1 * inv_hw
    var = jnp.maximum(s2 * inv_hw - mean * mean, 0.0)
    inv_std = jax.lax.rsqrt(var + _GN_EPS)

    s_row = p_a * inv_std                               # (Rb, 1)
    t_row = p_cw * mean + p_t0 - s_row * mean           # (Rb, 1)

    gate = jax.nn.sigmoid(s_row * x + t_row)            # fused elementwise pass
    o_ref[...] = (x * gate).astype(o_ref.dtype)


def _pick_block_rows(total_rows, hwp, itemsize, target_bytes=2 << 20):
    """Largest row-tile (multiple of 8, dividing total_rows) that stays under
    target_bytes while keeping >= 2 grid steps (v7x megacore sharding)."""
    best = None
    for rb in range(8, total_rows + 1, 8):
        if total_rows % rb != 0:
            continue
        steps = total_rows // rb
        blk = rb * hwp * itemsize
        key = (blk > target_bytes, steps < 2, -blk)
        if best is None or key < best[0]:
            best = (key, rb)
    if best is None:
        return total_rows  # tiny fallback: single full-array block
    return best[1]


def shuffle_attention_pallas(x, cweight, cbias, sweight, sbias, gn_w, gn_b, G=8):
    """x: (b, C, H, W), C divisible by 2*G. Params flattened to (C2,)."""
    b, c, h, w = x.shape
    c2 = c // (2 * G)
    hw = h * w
    rows_per_group = 2 * c2
    total_groups = b * G
    total_rows = total_groups * rows_per_group

    # --- flatten to a lane/sublane dense 2D slab, pad HW to a lane multiple ---
    hwp = ((hw + 127) // 128) * 128
    x2 = x.reshape(total_rows, hw)
    if hwp != hw:
        # zero padding keeps the sums exact; denominators use the true HW
        x2 = jnp.pad(x2, ((0, 0), (0, hwp - hw)))

    # --- pack per-row coefficients [a, cw, t0] (fused GN + scale/shift affine) ---
    f32 = jnp.float32
    cw = cweight.reshape(c2).astype(f32)
    cb = cbias.reshape(c2).astype(f32)
    sw = sweight.reshape(c2).astype(f32)
    sb = sbias.reshape(c2).astype(f32)
    gw = gn_w.reshape(c2).astype(f32)
    gb_ = gn_b.reshape(c2).astype(f32)

    a_sp = sw * gw                 # spatial-branch slope
    t_sp = sw * gb_ + sb           # spatial-branch offset
    zeros = jnp.zeros_like(cw)

    # within each group-batch: first c2 rows = channel branch, last c2 = spatial
    p_a = jnp.concatenate([zeros, a_sp])
    p_cw = jnp.concatenate([cw, zeros])
    p_t0 = jnp.concatenate([cb, t_sp])
    params_group = jnp.stack([p_a, p_cw, p_t0], axis=-1)       # (2*c2, 3)
    params = jnp.tile(params_group, (total_groups, 1))         # (total_rows, 3)

    itemsize = jnp.dtype(x.dtype).itemsize
    rb = _pick_block_rows(total_rows, hwp, itemsize)
    grid = (total_rows // rb,)

    kernel = functools.partial(_shuffle_attention_kernel, inv_hw=1.0 / hw)

    out2 = pl.pallas_call(
        kernel,
        out_shape=jax.ShapeDtypeStruct((total_rows, hwp), x.dtype),
        grid_spec=pltpu.PrefetchScalarGridSpec(
            num_scalar_prefetch=0,
            grid=grid,
            in_specs=[
                pl.BlockSpec((rb, hwp), lambda i: (i, 0)),
                pl.BlockSpec((rb, 3), lambda i: (i, 0)),
            ],
            out_specs=pl.BlockSpec((rb, hwp), lambda i: (i, 0)),
        ),
        compiler_params=pltpu.CompilerParams(
            dimension_semantics=("parallel",),
            vmem_limit_bytes=32 << 20,
        ),
    )(x2, params)

    if hwp != hw:
        out2 = out2[:, :hw]
    out = out2.reshape(b, c, h, w)

    # TODO(synk): channel_shuffle(groups=2) is a strided channel interleave that
    # is not expressible as a rectangular output BlockSpec; it stays as a cheap
    # XLA transpose (or can be folded into the consumer's input index_map).
    out = out.reshape(b, 2, c // 2, h, w).transpose(0, 2, 1, 3, 4)
    return out.reshape(b, c, h, w)


def shuffle_attention_reference(x, cweight, cbias, sweight, sbias, gn_w, gn_b, G=8):
    """Pure-JAX reference mirroring the PyTorch forward."""
    b, c, h, w = x.shape
    c2 = c // (2 * G)
    xg = x.reshape(b * G, 2 * c2, h, w)
    x0, x1 = xg[:, :c2], xg[:, c2:]

    cw = cweight.reshape(1, c2, 1, 1)
    cb = cbias.reshape(1, c2, 1, 1)
    sw = sweight.reshape(1, c2, 1, 1)
    sb = sbias.reshape(1, c2, 1, 1)
    gw = gn_w.reshape(1, c2, 1, 1)
    gb = gn_b.reshape(1, c2, 1, 1)

    mean0 = jnp.mean(x0, axis=(2, 3), keepdims=True)
    x_channel = x0 * jax.nn.sigmoid(cw * mean0 + cb)

    m1 = jnp.mean(x1, axis=(2, 3), keepdims=True)
    v1 = jnp.mean((x1 - m1) ** 2, axis=(2, 3), keepdims=True)
    xn = (x1 - m1) * jax.lax.rsqrt(v1 + _GN_EPS)
    xn = gw * xn + gb
    x_spatial = x1 * jax.nn.sigmoid(sw * xn + sb)

    out = jnp.concatenate([x_channel, x_spatial], axis=1).reshape(b, c, h, w)
    out = out.reshape(b, 2, c // 2, h, w).transpose(0, 2, 1, 3, 4)
    return out.reshape(b, c, h, w)


def _make_params(key, c2):
    k1, k2, k3, k4, k5, k6 = jax.random.split(key, 6)
    # deterministic, non-degenerate params (module defaults would be
    # cweight/sweight=0, cbias/sbias=1, gn_w=1, gn_b=0 -> trivial gates).
    cweight = 0.1 * jax.random.normal(k1, (c2,), dtype=jnp.float32)
    cbias = 1.0 + 0.1 * jax.random.normal(k2, (c2,), dtype=jnp.float32)
    sweight = 0.1 * jax.random.normal(k3, (c2,), dtype=jnp.float32)
    sbias = 1.0 + 0.1 * jax.random.normal(k4, (c2,), dtype=jnp.float32)
    gn_w = 1.0 + 0.1 * jax.random.normal(k5, (c2,), dtype=jnp.float32)
    gn_b = 0.1 * jax.random.normal(k6, (c2,), dtype=jnp.float32)
    return cweight, cbias, sweight, sbias, gn_w, gn_b


if __name__ == "__main__":
    key = jax.random.PRNGKey(0)
    kx1, kx2, kp = jax.random.split(key, 3)

    # main test: batch=2, channels=64, spatial 16x16, G=8 -> C2=4, HW=256
    B, C, H, W, G = 2, 64, 16, 16, 8
    C2 = C // (2 * G)
    params = _make_params(kp, C2)

    x = jax.random.normal(kx1, (B, C, H, W), dtype=jnp.float32)
    out = shuffle_attention_pallas(x, *params, G=G)
    out = jax.block_until_ready(out)
    ref = shuffle_attention_reference(x, *params, G=G)
    np.testing.assert_allclose(np.asarray(out), np.asarray(ref),
                               rtol=1e-5, atol=1e-5)

    # second test exercises the lane-padding path (HW = 14*14 = 196, not %128)
    x2 = jax.random.normal(kx2, (B, C, 14, 14), dtype=jnp.float32)
    out2 = shuffle_attention_pallas(x2, *params, G=G)
    out2 = jax.block_until_ready(out2)
    ref2 = shuffle_attention_reference(x2, *params, G=G)
    np.testing.assert_allclose(np.asarray(out2), np.asarray(ref2),
                               rtol=1e-5, atol=1e-5)

    print("KERNEL_OK")
</pallas_src>

<mosaic_0001>
module attributes {stable_mosaic.version = 11 : i64} {
  func.func @_shuffle_attention_kernel(%arg0: i32, %arg1: memref<64x256xf32, #tpu.memory_space<vmem>>, %arg2: memref<64x3xf32, #tpu.memory_space<vmem>>, %arg3: memref<64x256xf32, #tpu.memory_space<vmem>>) attributes {dimension_semantics = [#tpu.dimension_semantics<parallel>], iteration_bounds = array<i64: 2>, scalar_prefetch = 0 : i64, scratch_operands = 0 : i64, tpu.core_type = #tpu.core_type<tc>, window_params = [{transform_indices = @transform_0, window_bounds = array<i64: 64, 256>}, {transform_indices = @transform_1, window_bounds = array<i64: 64, 3>}, {transform_indices = @transform_2, window_bounds = array<i64: 64, 256>}]} {
    %c0 = arith.constant 0 : index
    %c0_0 = arith.constant 0 : index
    %0 = vector.load %arg1[%c0, %c0_0] : memref<64x256xf32, #tpu.memory_space<vmem>>, vector<64x256xf32>
    %c0_1 = arith.constant 0 : index
    %c0_2 = arith.constant 0 : index
    %1 = vector.load %arg2[%c0_1, %c0_2] : memref<64x3xf32, #tpu.memory_space<vmem>>, vector<64x3xf32>
    %2 = vector.extract_strided_slice %1 {offsets = [0, 0], sizes = [64, 1], strides = [1, 1]} : vector<64x3xf32> to vector<64x1xf32>
    %3 = vector.extract_strided_slice %1 {offsets = [0, 1], sizes = [64, 1], strides = [1, 1]} : vector<64x3xf32> to vector<64x1xf32>
    %4 = vector.extract_strided_slice %1 {offsets = [0, 2], sizes = [64, 1], strides = [1, 1]} : vector<64x3xf32> to vector<64x1xf32>
    %cst = arith.constant dense<0.000000e+00> : vector<64xf32>
    %5 = vector.multi_reduction <add>, %0, %cst [1] : vector<64x256xf32> to vector<64xf32>
    %6 = vector.shape_cast %5 : vector<64xf32> to vector<64x1xf32>
    %7 = arith.mulf %0, %0 : vector<64x256xf32>
    %cst_3 = arith.constant dense<0.000000e+00> : vector<64xf32>
    %8 = vector.multi_reduction <add>, %7, %cst_3 [1] : vector<64x256xf32> to vector<64xf32>
    %9 = vector.shape_cast %8 : vector<64xf32> to vector<64x1xf32>
    %cst_4 = arith.constant 3.906250e-03 : f32
    %10 = vector.broadcast %cst_4 : f32 to vector<64x1xf32>
    %11 = arith.mulf %6, %10 : vector<64x1xf32>
    %cst_5 = arith.constant 3.906250e-03 : f32
    %12 = vector.broadcast %cst_5 : f32 to vector<64x1xf32>
    %13 = arith.mulf %9, %12 : vector<64x1xf32>
    %14 = arith.mulf %11, %11 : vector<64x1xf32>
    %15 = arith.subf %13, %14 : vector<64x1xf32>
    %cst_6 = arith.constant 0.000000e+00 : f32
    %16 = vector.broadcast %cst_6 : f32 to vector<64x1xf32>
    %17 = arith.maximumf %15, %16 : vector<64x1xf32>
    %cst_7 = arith.constant 9.99999974E-6 : f32
    %18 = vector.broadcast %cst_7 : f32 to vector<64x1xf32>
    %19 = arith.addf %17, %18 : vector<64x1xf32>
    %20 = math.rsqrt %19 : vector<64x1xf32>
    %21 = arith.mulf %2, %20 : vector<64x1xf32>
    %22 = arith.mulf %3, %11 : vector<64x1xf32>
    %23 = arith.addf %22, %4 : vector<64x1xf32>
    %24 = arith.mulf %21, %11 : vector<64x1xf32>
    %25 = arith.subf %23, %24 : vector<64x1xf32>
    %26 = vector.broadcast %21 : vector<64x1xf32> to vector<64x256xf32>
    %27 = arith.mulf %26, %0 : vector<64x256xf32>
    %28 = vector.broadcast %25 : vector<64x1xf32> to vector<64x256xf32>
    %29 = arith.addf %27, %28 : vector<64x256xf32>
    %30 = arith.negf %29 : vector<64x256xf32>
    %31 = math.exp %30 : vector<64x256xf32>
    %cst_8 = arith.constant 1.000000e+00 : f32
    %32 = vector.broadcast %cst_8 : f32 to vector<64x256xf32>
    %33 = arith.addf %32, %31 : vector<64x256xf32>
    %34 = arith.divf %32, %33 : vector<64x256xf32>
    %35 = arith.mulf %0, %34 : vector<64x256xf32>
    %c0_9 = arith.constant 0 : index
    %c0_10 = arith.constant 0 : index
    %36 = vector.load %arg3[%c0_9, %c0_10] : memref<64x256xf32, #tpu.memory_space<vmem>>, vector<64x256xf32>
    tpu.vector_store %arg3[%c0_9, %c0_10], %35 {strides = array<i32>} : memref<64x256xf32, #tpu.memory_space<vmem>>, vector<64x256xf32>,
    return
  }
  func.func @transform_0(%arg0: i32) -> (i32, i32) {
    %c0_i32 = arith.constant 0 : i32
    %c0_i32_0 = arith.constant 0 : i32
    return %arg0, %c0_i32 : i32, i32
  }
  func.func @transform_1(%arg0: i32) -> (i32, i32) {
    %c0_i32 = arith.constant 0 : i32
    %c0_i32_0 = arith.constant 0 : i32
    return %arg0, %c0_i32 : i32, i32
  }
  func.func @transform_2(%arg0: i32) -> (i32, i32) {
    %c0_i32 = arith.constant 0 : i32
    %c0_i32_0 = arith.constant 0 : i32
    return %arg0, %c0_i32 : i32, i32
  }
}

</mosaic_0001>

<llo_original>
// kernel: tpu_custom_call.1
$region0: #{tpu_custom_call.1}
  #allocation0 [shape = 'u32[]', space=smem, size = 0x4, offset = 0x4, fixed_abs, tag = 'smem constant byte address 0x4 - core index']
  #allocation1 [shape = 'u32[144,128]{1,0:T(1,128)}', space=vmem, size = 0x12000, scoped, tag = 'internal scratch']
  %s0 = inlined_call_operand.hbm [shape: f32[128,256], index: 0, kind: input, shape index: {}]
  %s1 = inlined_call_operand.vmem [shape: f32[128,3], index: 1, kind: input, shape index: {}]
  %s2 = inlined_call_operand.hbm [shape: f32[128,256], index: 2, kind: output, shape index: {}]
  %s3 = sld [smem:[#allocation0]]
  $region45: #{tpu_custom_call.1} parent=0
    _
  %s5 = ssub.s32 1, %s3
  %s6 = scalar_select 0, %s5, %s3
  $region1: #{tpu_custom_call.1} parent=0
    #allocation2 [shape = 'u8[131072]{0}', space=vmem, size = 0x20000, scoped, tag = 'input window, operand 0']
    #allocation3 [shape = 's32[2]{0}', space=sflag, size = 0x8, scoped, tag = 'scoped memory for tpu_custom_call.1']
    #allocation4 [shape = 's32[2]{0}', space=sflag, size = 0x8, scoped, tag = 'scoped memory for tpu_custom_call.1']
    #allocation5 [shape = 'u8[131072]{0}', space=vmem, size = 0x20000, scoped, tag = 'output window, operand 0']
    %7 = vsyncpa [#allocation3], 0
    %s8 = scalar_lea.sflag [#allocation3], 1
    %9 = vsyncpa %s8, 0
    %10 = vsyncpa [#allocation4], 0
    %s11 = scalar_lea.sflag [#allocation4], 1
    %12 = vsyncpa %s11, 0
    loop: start=0, step=1, limit=4
    $region2: #{tpu_custom_call.1} parent=1 // loop_pre_header
      _
    $region3: #{tpu_custom_call.1} parent=1 // loop_header
      %s14 = sphi 0, %s18
      %p15 = scmp.ge.s32.totalorder %s14, 4
      %s24 = sphi 0, %s26
      %s27 = sphi 0, %s24
      %s28 = sphi 0, %s27
      %s44 = sphi 0, %s28
      %s50 = sphi 0, %s52
      %s53 = sphi 0, %s50
      %s54 = sphi 0, %s53
      %s70 = sphi 0, %s54
      %s76 = sphi 0, %s78
      %s79 = sphi 0, %s76
      %s80 = sphi 0, %s79
      %s96 = sphi 0, %s80
    $region4: #{tpu_custom_call.1} parent=1 // loop_header_branch
      %17 = sbr.rel (%p15) target = $region8
    $region5: #{tpu_custom_call.1} parent=1 // loop_body
      %s19 = ssub.s32 %s14, 1
      %s20 = ssub.s32 %s14, 2
      %s21 = sadd.s32 %s14, 1
      %s22 = ssub.s32 %s14, %s21
      %p23 = scmp.eq.s32.totalorder %s22, 0
      %s25 = sadd.s32 %s24, 1
      %s26 = scalar_select %p23, %s24, %s25
      %p29 = pneg %p23
      %p30 = scmp.eq.s32.totalorder %s14, 1
      %p31 = por %p29, %p30
      %p32 = scmp.ne.s32.totalorder %s24, %s27
      %p33 = scmp.eq.s32.totalorder %s14, 0
      %p34 = por %p32, %p33
      %p35 = scmp.ne.s32.totalorder %s24, %s27
      %p36 = scmp.eq.s32.totalorder %s19, 1
      %p37 = por %p35, %p36
      %p38 = scmp.ne.s32.totalorder %s27, %s28
      %p39 = scmp.eq.s32.totalorder %s19, 0
      %p40 = por %p38, %p39
      %p41 = scmp.ne.s32.totalorder %s27, %s28
      %p42 = scmp.eq.s32.totalorder %s20, 1
      %p43 = por %p41, %p42
      %p45 = scmp.ne.s32.totalorder %s28, %s44
      %p46 = scmp.eq.s32.totalorder %s20, 0
      %p47 = por %p45, %p46
      %s48 = ssub.s32 %s14, %s21
      %p49 = scmp.eq.s32.totalorder %s48, 0
      %s51 = sadd.s32 %s50, 1
      %s52 = scalar_select %p49, %s50, %s51
      %p55 = pneg %p49
      %p56 = scmp.eq.s32.totalorder %s14, 1
      %p57 = por %p55, %p56
      %p58 = scmp.ne.s32.totalorder %s50, %s53
      %p59 = scmp.eq.s32.totalorder %s14, 0
      %p60 = por %p58, %p59
      %p61 = scmp.ne.s32.totalorder %s50, %s53
      %p62 = scmp.eq.s32.totalorder %s19, 1
      %p63 = por %p61, %p62
      %p64 = scmp.ne.s32.totalorder %s53, %s54
      %p65 = scmp.eq.s32.totalorder %s19, 0
      %p66 = por %p64, %p65
      %p67 = scmp.ne.s32.totalorder %s53, %s54
      %p68 = scmp.eq.s32.totalorder %s20, 1
      %p69 = por %p67, %p68
      %p71 = scmp.ne.s32.totalorder %s54, %s70
      %p72 = scmp.eq.s32.totalorder %s20, 0
      %p73 = por %p71, %p72
      %s74 = ssub.s32 %s14, %s21
      %p75 = scmp.eq.s32.totalorder %s74, 0
      %s77 = sadd.s32 %s76, 1
      %s78 = scalar_select %p75, %s76, %s77
      %p81 = pneg %p75
      %p82 = scmp.eq.s32.totalorder %s14, 1
      %p83 = por %p81, %p82
      %p84 = scmp.ne.s32.totalorder %s76, %s79
      %p85 = scmp.eq.s32.totalorder %s14, 0
      %p86 = por %p84, %p85
      %p87 = scmp.ne.s32.totalorder %s76, %s79
      %p88 = scmp.eq.s32.totalorder %s19, 1
      %p89 = por %p87, %p88
      %p90 = scmp.ne.s32.totalorder %s79, %s80
      %p91 = scmp.eq.s32.totalorder %s19, 0
      %p92 = por %p90, %p91
      %p93 = scmp.ne.s32.totalorder %s79, %s80
      %p94 = scmp.eq.s32.totalorder %s20, 1
      %p95 = por %p93, %p94
      %p97 = scmp.ne.s32.totalorder %s80, %s96
      %p98 = scmp.eq.s32.totalorder %s20, 0
      %p99 = por %p97, %p98
      %p100 = scmp.le.s32.totalorder 1, %s14
      %p101 = scmp.lt.s32.totalorder %s14, 3
      %p102 = pnand %p100, %p101
      %p103 = pneg %p102
      // Predicated region
      $region9: #{tpu_custom_call.1} parent=5 // pred_check
        _
      $region10: #{tpu_custom_call.1} parent=5 // pred_check_branch
        %105 = sbr.rel (%p102) target = $region12
      $region11: #{tpu_custom_call.1} parent=5 // pred_region
        %s106 = ssub.s32 %s14, 1
      $region12: #{tpu_custom_call.1} parent=5 // pred_fallthru
        _
      %p107 = scmp.lt.s32.totalorder %s14, 2
      // Predicated region
      $region13: #{tpu_custom_call.1} parent=5 // pred_check
        %p108 = pneg %p107
      $region14: #{tpu_custom_call.1} parent=5 // pred_check_branch
        %110 = sbr.rel (%p108) target = $region16
      $region15: #{tpu_custom_call.1} parent=5 // pred_region
        // Predicated region
        $region17: #{tpu_custom_call.1} parent=15 // pred_check
          %p111 = pneg %p34
        $region18: #{tpu_custom_call.1} parent=15 // pred_check_branch
          %113 = sbr.rel (%p111) target = $region20
        $region19: #{tpu_custom_call.1} parent=15 // pred_region
          %s114 = sand.u32 %s24, 1
          %s115 = scalar_lea.sflag [#allocation3], %s114
          %s116 = sand.u32 %s24, 1
          %s117 = smul.addr %s116, 128
          %s118 = scalar_lea.vmem [#allocation2], %s117
          %s119 = smul.u32 8, %s14
          %s121 = ssub.s32 2048, 2048
          %122 = vsyncadd %s115, %s121
          %s123 = smul.addr %s119, 2
          %s124 = smul.addr %s123, 128
          %s125 = scalar_lea.hbm %s0, %s124
          %s126 = sshll.u32 %s118, 4
          %s127 = int_to_ptr.vmem [resolvable:$true] %s126
          %132 = dma.hbm_to_vmem [thread:$0]  %s125, 2048, %s127, %s115, 256, 256, 16
        $region20: #{tpu_custom_call.1} parent=15 // pred_fallthru
          _
        // Predicated region
        $region21: #{tpu_custom_call.1} parent=15 // pred_check
          %p133 = pneg %p60
        $region22: #{tpu_custom_call.1} parent=15 // pred_check_branch
          %135 = sbr.rel (%p133) target = $region24
        $region23: #{tpu_custom_call.1} parent=15 // pred_region
          %s136 = smul.u32 8, %s14
          %p137 = scmp.lt.s32.totalorder %s136, 15
          %s138 = scalar_select %p137, %s136, 15
          %s139 = smul.addr %s138, 8
          %s140 = scalar_lea.vmem %s1, %s139
          %s141 = smul.u32 8, %s14
        $region24: #{tpu_custom_call.1} parent=15 // pred_fallthru
          _
      $region16: #{tpu_custom_call.1} parent=5 // pred_fallthru
        _
      %p142 = scmp.le.s32.totalorder 1, %s14
      %p143 = scmp.lt.s32.totalorder %s14, 3
      %p144 = pnand %p142, %p143
      %p145 = pneg %p144
      // Predicated region
      $region25: #{tpu_custom_call.1} parent=5 // pred_check
        _
      $region26: #{tpu_custom_call.1} parent=5 // pred_check_branch
        %147 = sbr.rel (%p144) target = $region28
      $region27: #{tpu_custom_call.1} parent=5 // pred_region
        %s148 = ssub.s32 %s14, 1
        %s149 = sand.u32 %s27, 1
        %s150 = scalar_lea.sflag [#allocation3], %s149
        %s151 = sand.u32 %s27, 1
        %s152 = smul.addr %s151, 128
        %s153 = scalar_lea.vmem [#allocation2], %s152
        // Predicated region
        $region29: #{tpu_custom_call.1} parent=27 // pred_check
          %p154 = pneg %p40
        $region30: #{tpu_custom_call.1} parent=27 // pred_check_branch
          %156 = sbr.rel (%p154) target = $region32
        $region31: #{tpu_custom_call.1} parent=27 // pred_region
          %157 = dma.done %s150, 2048
        $region32: #{tpu_custom_call.1} parent=27 // pred_fallthru
          _
        %s158 = sand.u32 %s27, 1
        %s159 = scalar_lea.sflag [#allocation3], %s158
        %s160 = sand.u32 %s27, 1
        %s161 = smul.addr %s160, 128
        %s162 = scalar_lea.vmem [#allocation2], %s161
        %p163 = pneg %p40
        %p164 = pneg %p37
        %s165 = smul.u32 8, %s19
        %p166 = scmp.lt.s32.totalorder %s165, 15
        %s167 = scalar_select %p166, %s165, 15
        %s168 = smul.addr %s167, 8
        %s169 = scalar_lea.vmem %s1, %s168
        %p170 = pneg %p66
        %p171 = pneg %p63
        %p172 = pneg %p92
        %p173 = pneg %p89
        %s174 = sand.u32 %s79, 1
        %s175 = scalar_lea.sflag [#allocation4], %s174
        %s176 = sand.u32 %s79, 1
        %s177 = smul.addr %s176, 128
        %s178 = scalar_lea.vmem [#allocation5], %s177
        %s179 = smul.u32 8, %s19
        %s180 = smul.u32 8, %s19
        %p181 = scmp.lt.s32.totalorder %s180, 15
        %s182 = scalar_select %p181, %s180, 15
        %s183 = smul.addr %s182, 8
        %s184 = scalar_lea.vmem %s1, %s183
        %s185 = smul.u32 8, %s19
        %s186 = smul.u32 8, %s19
        %v187 = vld [vmem:[%s153] sm:$0xff]
        %v188 = vld [vmem:[%s153 + $0x8] sm:$0xff]
        %v189 = vld [vmem:[%s153 + $0x10] sm:$0xff]
        %v190 = vld [vmem:[%s153 + $0x18] sm:$0xff]
        %v191 = vld [vmem:[%s153 + $0x20] sm:$0xff]
        %v192 = vld [vmem:[%s153 + $0x28] sm:$0xff]
        %v193 = vld [vmem:[%s153 + $0x30] sm:$0xff]
        %v194 = vld [vmem:[%s153 + $0x38] sm:$0xff]
        %v195 = vld [vmem:[%s153 + $0x40] sm:$0xff]
        %v196 = vld [vmem:[%s153 + $0x48] sm:$0xff]
        %v197 = vld [vmem:[%s153 + $0x50] sm:$0xff]
        %v198 = vld [vmem:[%s153 + $0x58] sm:$0xff]
        %v199 = vld [vmem:[%s153 + $0x60] sm:$0xff]
        %v200 = vld [vmem:[%s153 + $0x68] sm:$0xff]
        %v201 = vld [vmem:[%s153 + $0x70] sm:$0xff]
        %v202 = vld [vmem:[%s153 + $0x78] sm:$0xff]
        %v203 = vld [vmem:[%s184] sm:$0xff]
        %v204 = vld [vmem:[%s184 + $0x8] sm:$0xff]
        %v205 = vld [vmem:[%s184 + $0x10] sm:$0xff]
        %v206 = vld [vmem:[%s184 + $0x18] sm:$0xff]
        %v207 = vld [vmem:[%s184 + $0x20] sm:$0xff]
        %v208 = vld [vmem:[%s184 + $0x28] sm:$0xff]
        %v209 = vld [vmem:[%s184 + $0x30] sm:$0xff]
        %v210 = vld [vmem:[%s184 + $0x38] sm:$0xff]
        %v211 = vadd.f32 %v187, %v188
        %212 = vadd.xlane.f32.xlu0 %v211
        %v213 = vpop.xlane.xlu0 %212
        %v214 = vadd.f32 %v189, %v190
        %215 = vadd.xlane.f32.xlu0 %v214
        %v216 = vpop.xlane.xlu0 %215
        %v217 = vadd.f32 %v191, %v192
        %218 = vadd.xlane.f32.xlu0 %v217
        %v219 = vpop.xlane.xlu0 %218
        %v220 = vadd.f32 %v193, %v194
        %221 = vadd.xlane.f32.xlu0 %v220
        %v222 = vpop.xlane.xlu0 %221
        %v223 = vadd.f32 %v195, %v196
        %224 = vadd.xlane.f32.xlu0 %v223
        %v225 = vpop.xlane.xlu0 %224
        %v226 = vadd.f32 %v197, %v198
        %227 = vadd.xlane.f32.xlu0 %v226
        %v228 = vpop.xlane.xlu0 %227
        %v229 = vadd.f32 %v199, %v200
        %230 = vadd.xlane.f32.xlu0 %v229
        %v231 = vpop.xlane.xlu0 %230
        %v232 = vadd.f32 %v201, %v202
        %233 = vadd.xlane.f32.xlu0 %v232
        %v234 = vpop.xlane.xlu0 %233
        %v235 = vmul.f32 %v187, %v187
        %v236 = vmul.f32 %v188, %v188
        %v237 = vmul.f32 %v189, %v189
        %v238 = vmul.f32 %v190, %v190
        %v239 = vmul.f32 %v191, %v191
        %v240 = vmul.f32 %v192, %v192
        %v241 = vmul.f32 %v193, %v193
        %v242 = vmul.f32 %v194, %v194
        %v243 = vmul.f32 %v195, %v195
        %v244 = vmul.f32 %v196, %v196
        %v245 = vmul.f32 %v197, %v197
        %v246 = vmul.f32 %v198, %v198
        %v247 = vmul.f32 %v199, %v199
        %v248 = vmul.f32 %v200, %v200
        %v249 = vmul.f32 %v201, %v201
        %v250 = vmul.f32 %v202, %v202
        %v251 = vadd.f32 %v235, %v236
        %252 = vadd.xlane.f32.xlu0 %v251
        %v253 = vpop.xlane.xlu0 %252
        %v254 = vadd.f32 %v237, %v238
        %255 = vadd.xlane.f32.xlu0 %v254
        %v256 = vpop.xlane.xlu0 %255
        %v257 = vadd.f32 %v239, %v240
        %258 = vadd.xlane.f32.xlu0 %v257
        %v259 = vpop.xlane.xlu0 %258
        %v260 = vadd.f32 %v241, %v242
        %261 = vadd.xlane.f32.xlu0 %v260
        %v262 = vpop.xlane.xlu0 %261
        %v263 = vadd.f32 %v243, %v244
        %264 = vadd.xlane.f32.xlu0 %v263
        %v265 = vpop.xlane.xlu0 %264
        %v266 = vadd.f32 %v245, %v246
        %267 = vadd.xlane.f32.xlu0 %v266
        %v268 = vpop.xlane.xlu0 %267
        %v269 = vadd.f32 %v247, %v248
        %270 = vadd.xlane.f32.xlu0 %v269
        %v271 = vpop.xlane.xlu0 %270
        %v272 = vadd.f32 %v249, %v250
        %273 = vadd.xlane.f32.xlu0 %v272
        %v274 = vpop.xlane.xlu0 %273
        %v275 = vmul.f32 %v213, 0.00390625
        %v276 = vmul.f32 %v216, 0.00390625
        %v277 = vmul.f32 %v219, 0.00390625
        %v278 = vmul.f32 %v222, 0.00390625
        %v279 = vmul.f32 %v225, 0.00390625
        %v280 = vmul.f32 %v228, 0.00390625
        %v281 = vmul.f32 %v231, 0.00390625
        %v282 = vmul.f32 %v234, 0.00390625
        %v283 = vmul.f32 %v253, 0.00390625
        %v284 = vmul.f32 %v256, 0.00390625
        %v285 = vmul.f32 %v259, 0.00390625
        %v286 = vmul.f32 %v262, 0.00390625
        %v287 = vmul.f32 %v265, 0.00390625
        %v288 = vmul.f32 %v268, 0.00390625
        %v289 = vmul.f32 %v271, 0.00390625
        %v290 = vmul.f32 %v274, 0.00390625
        %v291 = vmul.f32 %v275, %v275
        %v292 = vmul.f32 %v276, %v276
        %v293 = vmul.f32 %v277, %v277
        %v294 = vmul.f32 %v278, %v278
        %v295 = vmul.f32 %v279, %v279
        %v296 = vmul.f32 %v280, %v280
        %v297 = vmul.f32 %v281, %v281
        %v298 = vmul.f32 %v282, %v282
        %v299 = vsub.f32 %v283, %v291
        %v300 = vsub.f32 %v284, %v292
        %v301 = vsub.f32 %v285, %v293
        %v302 = vsub.f32 %v286, %v294
        %v303 = vsub.f32 %v287, %v295
        %v304 = vsub.f32 %v288, %v296
        %v305 = vsub.f32 %v289, %v297
        %v306 = vsub.f32 %v290, %v298
        %v307 = vmax.f32 %v299, 0.0
        %v308 = vmax.f32 %v300, 0.0
        %v309 = vmax.f32 %v301, 0.0
        %v310 = vmax.f32 %v302, 0.0
        %v311 = vmax.f32 %v303, 0.0
        %v312 = vmax.f32 %v304, 0.0
        %v313 = vmax.f32 %v305, 0.0
        %v314 = vmax.f32 %v306, 0.0
        %v315 = vadd.f32 %v307, 1e-05
        %v316 = vadd.f32 %v308, 1e-05
        %v317 = vadd.f32 %v309, 1e-05
        %v318 = vadd.f32 %v310, 1e-05
        %v319 = vadd.f32 %v311, 1e-05
        %v320 = vadd.f32 %v312, 1e-05
        %v321 = vadd.f32 %v313, 1e-05
        %v322 = vadd.f32 %v314, 1e-05
        %v323 = vrsqrt.pop %v315
        %v324 = vrsqrt.pop %v316
        %v325 = vrsqrt.pop %v317
        %v326 = vrsqrt.pop %v318
        %v327 = vrsqrt.pop %v319
        %v328 = vrsqrt.pop %v320
        %v329 = vrsqrt.pop %v321
        %v330 = vrsqrt.pop %v322
        %v331 = vmul.f32 %v203, %v323
        %v332 = vmul.f32 %v204, %v324
        %v333 = vmul.f32 %v205, %v325
        %v334 = vmul.f32 %v206, %v326
        %v335 = vmul.f32 %v207, %v327
        %v336 = vmul.f32 %v208, %v328
        %v337 = vmul.f32 %v209, %v329
        %v338 = vmul.f32 %v210, %v330
        %v339 = vmul.f32 %v203, %v275
        %v340 = vmul.f32 %v204, %v276
        %v341 = vmul.f32 %v205, %v277
        %v342 = vmul.f32 %v206, %v278
        %v343 = vmul.f32 %v207, %v279
        %v344 = vmul.f32 %v208, %v280
        %v345 = vmul.f32 %v209, %v281
        %v346 = vmul.f32 %v210, %v282
        %355 = vrot.lane.b32.xlu0 %v203, 127
        %v356 = vpop.permute.xlu0 %355
        %357 = vrot.lane.b32.xlu0 %v204, 127
        %v358 = vpop.permute.xlu0 %357
        %359 = vrot.lane.b32.xlu0 %v205, 127
        %v360 = vpop.permute.xlu0 %359
        %361 = vrot.lane.b32.xlu0 %v206, 127
        %v362 = vpop.permute.xlu0 %361
        %363 = vrot.lane.b32.xlu0 %v207, 127
        %v364 = vpop.permute.xlu0 %363
        %365 = vrot.lane.b32.xlu0 %v208, 127
        %v366 = vpop.permute.xlu0 %365
        %367 = vrot.lane.b32.xlu0 %v209, 127
        %v368 = vpop.permute.xlu0 %367
        %369 = vrot.lane.b32.xlu0 %v210, 127
        %v370 = vpop.permute.xlu0 %369
        %v379 = vadd.f32 %v339, %v356
        %v380 = vadd.f32 %v340, %v358
        %v381 = vadd.f32 %v341, %v360
        %v382 = vadd.f32 %v342, %v362
        %v383 = vadd.f32 %v343, %v364
        %v384 = vadd.f32 %v344, %v366
        %v385 = vadd.f32 %v345, %v368
        %v386 = vadd.f32 %v346, %v370
        %v387 = vmul.f32 %v331, %v275
        %v388 = vmul.f32 %v332, %v276
        %v389 = vmul.f32 %v333, %v277
        %v390 = vmul.f32 %v334, %v278
        %v391 = vmul.f32 %v335, %v279
        %v392 = vmul.f32 %v336, %v280
        %v393 = vmul.f32 %v337, %v281
        %v394 = vmul.f32 %v338, %v282
        %403 = vrot.lane.b32.xlu0 %v387, 1
        %v404 = vpop.permute.xlu0 %403
        %405 = vrot.lane.b32.xlu0 %v388, 1
        %v406 = vpop.permute.xlu0 %405
        %407 = vrot.lane.b32.xlu0 %v389, 1
        %v408 = vpop.permute.xlu0 %407
        %409 = vrot.lane.b32.xlu0 %v390, 1
        %v410 = vpop.permute.xlu0 %409
        %411 = vrot.lane.b32.xlu0 %v391, 1
        %v412 = vpop.permute.xlu0 %411
        %413 = vrot.lane.b32.xlu0 %v392, 1
        %v414 = vpop.permute.xlu0 %413
        %415 = vrot.lane.b32.xlu0 %v393, 1
        %v416 = vpop.permute.xlu0 %415
        %417 = vrot.lane.b32.xlu0 %v394, 1
        %v418 = vpop.permute.xlu0 %417
        %v427 = vsub.f32 %v379, %v404
        %v428 = vsub.f32 %v380, %v406
        %v429 = vsub.f32 %v381, %v408
        %v430 = vsub.f32 %v382, %v410
        %v431 = vsub.f32 %v383, %v412
        %v432 = vsub.f32 %v384, %v414
        %v433 = vsub.f32 %v385, %v416
        %v434 = vsub.f32 %v386, %v418
        %436 = vset.pattern.permute.xlu0 0
        %437 = vperm.xlu0 %436, %v331
        %v438 = vpop.permute.xlu0 %437
        %441 = vset.pattern.permute.xlu0 0
        %442 = vperm.xlu0 %441, %v332
        %v443 = vpop.permute.xlu0 %442
        %446 = vset.pattern.permute.xlu0 0
        %447 = vperm.xlu0 %446, %v333
        %v448 = vpop.permute.xlu0 %447
        %451 = vset.pattern.permute.xlu0 0
        %452 = vperm.xlu0 %451, %v334
        %v453 = vpop.permute.xlu0 %452
        %456 = vset.pattern.permute.xlu0 0
        %457 = vperm.xlu0 %456, %v335
        %v458 = vpop.permute.xlu0 %457
        %461 = vset.pattern.permute.xlu0 0
        %462 = vperm.xlu0 %461, %v336
        %v463 = vpop.permute.xlu0 %462
        %466 = vset.pattern.permute.xlu0 0
        %467 = vperm.xlu0 %466, %v337
        %v468 = vpop.permute.xlu0 %467
        %471 = vset.pattern.permute.xlu0 0
        %472 = vperm.xlu0 %471, %v338
        %v473 = vpop.permute.xlu0 %472
        %v475 = vmul.f32 %v438, %v187
        %v476 = vmul.f32 %v438, %v188
        %v477 = vmul.f32 %v443, %v189
        %v478 = vmul.f32 %v443, %v190
        %v479 = vmul.f32 %v448, %v191
        %v480 = vmul.f32 %v448, %v192
        %v481 = vmul.f32 %v453, %v193
        %v482 = vmul.f32 %v453, %v194
        %v483 = vmul.f32 %v458, %v195
        %v484 = vmul.f32 %v458, %v196
        %v485 = vmul.f32 %v463, %v197
        %v486 = vmul.f32 %v463, %v198
        %v487 = vmul.f32 %v468, %v199
        %v488 = vmul.f32 %v468, %v200
        %v489 = vmul.f32 %v473, %v201
        %v490 = vmul.f32 %v473, %v202
        %492 = vset.pattern.permute.xlu0 1
        %493 = vperm.xlu0 %492, %v427
        %v494 = vpop.permute.xlu0 %493
        %497 = vset.pattern.permute.xlu0 1
        %498 = vperm.xlu0 %497, %v428
        %v499 = vpop.permute.xlu0 %498
        %502 = vset.pattern.permute.xlu0 1
        %503 = vperm.xlu0 %502, %v429
        %v504 = vpop.permute.xlu0 %503
        %507 = vset.pattern.permute.xlu0 1
        %508 = vperm.xlu0 %507, %v430
        %v509 = vpop.permute.xlu0 %508
        %512 = vset.pattern.permute.xlu0 1
        %513 = vperm.xlu0 %512, %v431
        %v514 = vpop.permute.xlu0 %513
        %517 = vset.pattern.permute.xlu0 1
        %518 = vperm.xlu0 %517, %v432
        %v519 = vpop.permute.xlu0 %518
        %522 = vset.pattern.permute.xlu0 1
        %523 = vperm.xlu0 %522, %v433
        %v524 = vpop.permute.xlu0 %523
        %527 = vset.pattern.permute.xlu0 1
        %528 = vperm.xlu0 %527, %v434
        %v529 = vpop.permute.xlu0 %528
        %v531 = vadd.f32 %v475, %v494
        %v532 = vadd.f32 %v476, %v494
        %v533 = vadd.f32 %v477, %v499
        %v534 = vadd.f32 %v478, %v499
        %v535 = vadd.f32 %v479, %v504
        %v536 = vadd.f32 %v480, %v504
        %v537 = vadd.f32 %v481, %v509
        %v538 = vadd.f32 %v482, %v509
        %v539 = vadd.f32 %v483, %v514
        %v540 = vadd.f32 %v484, %v514
        %v541 = vadd.f32 %v485, %v519
        %v542 = vadd.f32 %v486, %v519
        %v543 = vadd.f32 %v487, %v524
        %v544 = vadd.f32 %v488, %v524
        %v545 = vadd.f32 %v489, %v529
        %v546 = vadd.f32 %v490, %v529
        %v547 = vxor.u32 %v531, 2147483648
        %v548 = vxor.u32 %v532, 2147483648
        %v549 = vxor.u32 %v533, 2147483648
        %v550 = vxor.u32 %v534, 2147483648
        %v551 = vxor.u32 %v535, 2147483648
        %v552 = vxor.u32 %v536, 2147483648
        %v553 = vxor.u32 %v537, 2147483648
        %v554 = vxor.u32 %v538, 2147483648
        %v555 = vxor.u32 %v539, 2147483648
        %v556 = vxor.u32 %v540, 2147483648
        %v557 = vxor.u32 %v541, 2147483648
        %v558 = vxor.u32 %v542, 2147483648
        %v559 = vxor.u32 %v543, 2147483648
        %v560 = vxor.u32 %v544, 2147483648
        %v561 = vxor.u32 %v545, 2147483648
        %v562 = vxor.u32 %v546, 2147483648
        %v563 = vmul.f32 %v547, 1.442695
        %v564 = vpow.pop %v563
        %v565 = vmul.f32 %v548, 1.442695
        %v566 = vpow.pop %v565
        %v567 = vmul.f32 %v549, 1.442695
        %v568 = vpow.pop %v567
        %v569 = vmul.f32 %v550, 1.442695
        %v570 = vpow.pop %v569
        %v571 = vmul.f32 %v551, 1.442695
        %v572 = vpow.pop %v571
        %v573 = vmul.f32 %v552, 1.442695
        %v574 = vpow.pop %v573
        %v575 = vmul.f32 %v553, 1.442695
        %v576 = vpow.pop %v575
        %v577 = vmul.f32 %v554, 1.442695
        %v578 = vpow.pop %v577
        %v579 = vmul.f32 %v555, 1.442695
        %v580 = vpow.pop %v579
        %v581 = vmul.f32 %v556, 1.442695
        %v582 = vpow.pop %v581
        %v583 = vmul.f32 %v557, 1.442695
        %v584 = vpow.pop %v583
        %v585 = vmul.f32 %v558, 1.442695
        %v586 = vpow.pop %v585
        %v587 = vmul.f32 %v559, 1.442695
        %v588 = vpow.pop %v587
        %v589 = vmul.f32 %v560, 1.442695
        %v590 = vpow.pop %v589
        %v591 = vmul.f32 %v561, 1.442695
        %v592 = vpow.pop %v591
        %v593 = vmul.f32 %v562, 1.442695
        %v594 = vpow.pop %v593
        %v595 = vadd.f32 %v564, 1.0
        %v596 = vadd.f32 %v566, 1.0
        %v597 = vadd.f32 %v568, 1.0
        %v598 = vadd.f32 %v570, 1.0
        %v599 = vadd.f32 %v572, 1.0
        %v600 = vadd.f32 %v574, 1.0
        %v601 = vadd.f32 %v576, 1.0
        %v602 = vadd.f32 %v578, 1.0
        %v603 = vadd.f32 %v580, 1.0
        %v604 = vadd.f32 %v582, 1.0
        %v605 = vadd.f32 %v584, 1.0
        %v606 = vadd.f32 %v586, 1.0
        %v607 = vadd.f32 %v588, 1.0
        %v608 = vadd.f32 %v590, 1.0
        %v609 = vadd.f32 %v592, 1.0
        %v610 = vadd.f32 %v594, 1.0
        %v611 = vrcp.pop %v595
        %v612 = vmul.f32 1.0, %v611
        %v613 = vrcp.pop %v596
        %v614 = vmul.f32 1.0, %v613
        %v615 = vrcp.pop %v597
        %v616 = vmul.f32 1.0, %v615
        %v617 = vrcp.pop %v598
        %v618 = vmul.f32 1.0, %v617
        %v619 = vrcp.pop %v599
        %v620 = vmul.f32 1.0, %v619
        %v621 = vrcp.pop %v600
        %v622 = vmul.f32 1.0, %v621
        %v623 = vrcp.pop %v601
        %v624 = vmul.f32 1.0, %v623
        %v625 = vrcp.pop %v602
        %v626 = vmul.f32 1.0, %v625
        %v627 = vrcp.pop %v603
        %v628 = vmul.f32 1.0, %v627
        %v629 = vrcp.pop %v604
        %v630 = vmul.f32 1.0, %v629
        %v631 = vrcp.pop %v605
        %v632 = vmul.f32 1.0, %v631
        %v633 = vrcp.pop %v606
        %v634 = vmul.f32 1.0, %v633
        %v635 = vrcp.pop %v607
        %v636 = vmul.f32 1.0, %v635
        %v637 = vrcp.pop %v608
        %v638 = vmul.f32 1.0, %v637
        %v639 = vrcp.pop %v609
        %v640 = vmul.f32 1.0, %v639
        %v641 = vrcp.pop %v610
        %v642 = vmul.f32 1.0, %v641
        %v643 = vmul.f32 %v187, %v612
        %v644 = vmul.f32 %v188, %v614
        %v645 = vmul.f32 %v189, %v616
        %v646 = vmul.f32 %v190, %v618
        %v647 = vmul.f32 %v191, %v620
        %v648 = vmul.f32 %v192, %v622
        %v649 = vmul.f32 %v193, %v624
        %v650 = vmul.f32 %v194, %v626
        %v651 = vmul.f32 %v195, %v628
        %v652 = vmul.f32 %v196, %v630
        %v653 = vmul.f32 %v197, %v632
        %v654 = vmul.f32 %v198, %v634
        %v655 = vmul.f32 %v199, %v636
        %v656 = vmul.f32 %v200, %v638
        %v657 = vmul.f32 %v201, %v640
        %v658 = vmul.f32 %v202, %v642
        %659 = vst [vmem:[%s178] sm:$0xff] %v643
        %660 = vst [vmem:[%s178 + $0x8] sm:$0xff] %v644
        %661 = vst [vmem:[%s178 + $0x10] sm:$0xff] %v645
        %662 = vst [vmem:[%s178 + $0x18] sm:$0xff] %v646
        %663 = vst [vmem:[%s178 + $0x20] sm:$0xff] %v647
        %664 = vst [vmem:[%s178 + $0x28] sm:$0xff] %v648
        %665 = vst [vmem:[%s178 + $0x30] sm:$0xff] %v649
        %666 = vst [vmem:[%s178 + $0x38] sm:$0xff] %v650
        %667 = vst [vmem:[%s178 + $0x40] sm:$0xff] %v651
        %668 = vst [vmem:[%s178 + $0x48] sm:$0xff] %v652
        %669 = vst [vmem:[%s178 + $0x50] sm:$0xff] %v653
        %670 = vst [vmem:[%s178 + $0x58] sm:$0xff] %v654
        %671 = vst [vmem:[%s178 + $0x60] sm:$0xff] %v655
        %672 = vst [vmem:[%s178 + $0x68] sm:$0xff] %v656
        %673 = vst [vmem:[%s178 + $0x70] sm:$0xff] %v657
        %674 = vst [vmem:[%s178 + $0x78] sm:$0xff] %v658
        %s675 = sand.u32 %s79, 1
        %s676 = scalar_lea.sflag [#allocation4], %s675
        %s677 = sand.u32 %s79, 1
        %s678 = smul.addr %s677, 128
        %s679 = scalar_lea.vmem [#allocation5], %s678
        // Predicated region
        $region33: #{tpu_custom_call.1} parent=27 // pred_check
          %p680 = pneg %p89
        $region34: #{tpu_custom_call.1} parent=27 // pred_check_branch
          %682 = sbr.rel (%p680) target = $region36
        $region35: #{tpu_custom_call.1} parent=27 // pred_region
          %s683 = smul.u32 8, %s19
          %s685 = ssub.s32 2048, 2048
          %686 = vsyncadd %s676, %s685
          %s687 = smul.addr %s683, 2
          %s688 = smul.addr %s687, 128
          %s689 = scalar_lea.hbm %s2, %s688
          %s690 = sshll.u32 %s679, 4
          %s691 = int_to_ptr.vmem [resolvable:$true] %s690
          %696 = dma.vmem_to_hbm [thread:$0]  %s691, 2048, %s689, %s676, 256, 256, 16
        $region36: #{tpu_custom_call.1} parent=27 // pred_fallthru
          _
      $region28: #{tpu_custom_call.1} parent=5 // pred_fallthru
        _
      %p697 = scmp.le.s32.totalorder 2, %s14
      // Predicated region
      $region37: #{tpu_custom_call.1} parent=5 // pred_check
        %p698 = pneg %p697
      $region38: #{tpu_custom_call.1} parent=5 // pred_check_branch
        %700 = sbr.rel (%p698) target = $region40
      $region39: #{tpu_custom_call.1} parent=5 // pred_region
        %s701 = ssub.s32 %s14, 2
        // Predicated region
        $region41: #{tpu_custom_call.1} parent=39 // pred_check
          %p702 = pneg %p95
        $region42: #{tpu_custom_call.1} parent=39 // pred_check_branch
          %704 = sbr.rel (%p702) target = $region44
        $region43: #{tpu_custom_call.1} parent=39 // pred_region
          %s705 = sand.u32 %s80, 1
          %s706 = scalar_lea.sflag [#allocation4], %s705
          %s707 = sand.u32 %s80, 1
          %s708 = smul.addr %s707, 128
          %s709 = scalar_lea.vmem [#allocation5], %s708
          %710 = dma.done %s706, 2048
        $region44: #{tpu_custom_call.1} parent=39 // pred_fallthru
          _
      $region40: #{tpu_custom_call.1} parent=5 // pred_fallthru
        _
    $region6: #{tpu_custom_call.1} parent=1 // loop_footer
      %s18 = sadd.s32 1, %s14
    $region7: #{tpu_custom_call.1} parent=1 // loop_footer_branch
      %13 = sbr.rel target = $region3
    $region8: #{tpu_custom_call.1} parent=1 // loop_exit
      _
    %711 = vsyncpa [#allocation3], 1
    %s712 = scalar_lea.sflag [#allocation3], 1
    %713 = vsyncpa %s712, 1
    %714 = vsyncpa [#allocation4], 1
    %s715 = scalar_lea.sflag [#allocation4], 1
    %716 = vsyncpa %s715, 1

</llo_original>
